<compile_context>
chip_gen: v7x
topology: tpu7x:2x2x1
jax: 0.10.0
libtpu: 0.0.40
codegen_flags: <defaults>
</compile_context>

<pallas_src>
import math

import jax
import jax.numpy as jnp
from jax.experimental import pallas as pl
from jax.experimental.pallas import tpu as pltpu


def _round_up(x, m):
    return ((x + m - 1) // m) * m


# ---------------------------------------------------------------------------
# Parameter construction (deterministic, mirrors torchaudio defaults)
# ---------------------------------------------------------------------------
def hamming_window_periodic(win_length: int) -> jnp.ndarray:
    # torch.hamming_window(win_length) (periodic=True default)
    n = jnp.arange(win_length, dtype=jnp.float32)
    return 0.54 - 0.46 * jnp.cos(2.0 * math.pi * n / win_length)


def padded_window(win_length: int, n_fft: int) -> jnp.ndarray:
    # torch.stft zero-pads the window to n_fft, centered.
    w = hamming_window_periodic(win_length)
    left = (n_fft - win_length) // 2
    right = n_fft - win_length - left
    return jnp.pad(w, (left, right))


def dft_matrices(n_fft: int):
    # One-sided DFT: X[k] = sum_n x[n] * exp(-2*pi*i*k*n/N), k = 0..N/2
    # (n*k) reduced mod n_fft in integer arithmetic before scaling so the
    # float32 cos/sin arguments stay small and exact.
    n_freq = n_fft // 2 + 1
    n = jnp.arange(n_fft, dtype=jnp.int32)[:, None]
    k = jnp.arange(n_freq, dtype=jnp.int32)[None, :]
    nk = (n * k) % n_fft
    ang = 2.0 * math.pi * nk.astype(jnp.float32) / n_fft
    # sign of the imaginary part is irrelevant for the power spectrum
    return jnp.cos(ang), jnp.sin(ang)  # each (n_fft, n_freq)


def mel_filterbank(n_freqs, f_min, f_max, n_mels, sample_rate):
    # torchaudio.functional.melscale_fbanks, mel_scale='htk', norm=None
    def hz_to_mel(f):
        return 2595.0 * jnp.log10(1.0 + f / 700.0)

    def mel_to_hz(m):
        return 700.0 * (10.0 ** (m / 2595.0) - 1.0)

    all_freqs = jnp.linspace(0.0, sample_rate // 2, n_freqs)
    m_min = hz_to_mel(jnp.float32(f_min))
    m_max = hz_to_mel(jnp.float32(f_max))
    m_pts = jnp.linspace(m_min, m_max, n_mels + 2)
    f_pts = mel_to_hz(m_pts)

    f_diff = f_pts[1:] - f_pts[:-1]                       # (n_mels + 1,)
    slopes = f_pts[None, :] - all_freqs[:, None]          # (n_freqs, n_mels + 2)
    down = -slopes[:, :-2] / f_diff[:-1]                  # (n_freqs, n_mels)
    up = slopes[:, 2:] / f_diff[1:]                       # (n_freqs, n_mels)
    fb = jnp.maximum(jnp.zeros_like(down), jnp.minimum(down, up))
    return fb.astype(jnp.float32)                         # (n_freqs, n_mels)


# ---------------------------------------------------------------------------
# Pallas kernel: (window-folded fused DFT) -> power -> (stacked mel fbank)
#   frames_ref : (TM, n_fft)        f32   M-tile of frame rows
#   dft_ref    : (n_fft, W)         f32   [win*cos | win*sin(nonzero bins) | 0]
#   fb_ref     : (W, n_mels_pad)    f32   [fb ; fb[sin bins] ; 0-pad]
#   out_ref    : (TM, n_mels_pad)   f32
# ---------------------------------------------------------------------------
def melspec_kernel(frames_ref, dft_ref, fb_ref, out_ref):
    y = jnp.dot(frames_ref[...], dft_ref[...],
                preferred_element_type=jnp.float32)        # (TM, W)  re|im
    power = y * y                                          # re^2 | im^2 | 0
    out_ref[...] = jnp.dot(power, fb_ref[...],
                           preferred_element_type=jnp.float32)


class Wave2MelSpecPreprocess:
    def __init__(self, sample_rate=16000, n_fft=512, win_length=400,
                 hop_length=160, f_min=20, f_max=7600, n_mels=80, coef=0.97,
                 tile_m=512):
        self.sample_rate = sample_rate
        self.n_fft = n_fft
        self.win_length = win_length
        self.hop_length = hop_length
        self.n_mels = n_mels
        self.coef = coef
        self.tile_m = tile_m
        self.n_freq = n_fft // 2 + 1

        # lane-padded mel width (80 -> 128)
        self.n_mels_pad = _round_up(n_mels, 128)

        # deterministic "parameters" (buffers) -- no checkpoint loading
        window = padded_window(win_length, n_fft)                       # (n_fft,)
        cos_m, sin_m = dft_matrices(n_fft)                              # (n_fft, n_freq)
        fb = mel_filterbank(self.n_freq, f_min, f_max, n_mels, sample_rate)

        # sin columns that are identically zero (k = 0 and, for even n_fft,
        # k = n_fft/2) are dropped.  For n_fft = 512 this makes the fused RHS
        # exactly 512 lanes wide (no MXU work on zero padding).
        if n_fft % 2 == 0:
            sin_keep = jnp.arange(1, self.n_freq - 1)
        else:
            sin_keep = jnp.arange(1, self.n_freq)

        # fold the window into the DFT matrices and fuse cos|sin into one RHS
        cos_w = window[:, None] * cos_m                                 # (n_fft, n_freq)
        sin_w = window[:, None] * sin_m[:, sin_keep]                    # (n_fft, n_freq-2)
        dft = jnp.concatenate([cos_w, sin_w], axis=1)                   # (n_fft, w_raw)
        w_raw = dft.shape[1]
        self.w_fused = _round_up(w_raw, 128)                            # 512 -> 512
        self.dft = jnp.pad(
            dft, ((0, 0), (0, self.w_fused - w_raw))).astype(jnp.float32)

        # stacked mel filterbank: mel = re^2 @ fb + im^2 @ fb[sin bins]
        fb_stack = jnp.concatenate([fb, fb[sin_keep, :]], axis=0)       # (w_raw, n_mels)
        self.fb = jnp.pad(
            fb_stack, ((0, self.w_fused - w_raw),
                       (0, self.n_mels_pad - n_mels))).astype(jnp.float32)

    def _frames(self, x):
        """Pre-emphasis + center reflect pad + overlapping frame extraction (glue)."""
        B, T = x.shape
        # PreEmphasis: reflect-pad one sample on the left, y_t = x_t - coef * x_{t-1}
        x_shift = jnp.concatenate([x[:, 1:2], x[:, :-1]], axis=1)  # [x1, x0, ..., x_{T-2}]
        y = x - self.coef * x_shift
        # torch.stft(center=True, pad_mode='reflect'): pad n_fft//2 on both sides
        p = self.n_fft // 2
        y_pad = jnp.pad(y, ((0, 0), (p, p)), mode="reflect")
        n_frames = T // self.hop_length + 1
        idx = (jnp.arange(n_frames)[:, None] * self.hop_length
               + jnp.arange(self.n_fft)[None, :])
        frames = y_pad[:, idx]                 # (B, n_frames, n_fft)
        return frames.astype(jnp.float32), n_frames

    def __call__(self, x):
        x = x.astype(jnp.float32)
        frames, n_frames = self._frames(x)
        B = frames.shape[0]
        n_fft, n_mels = self.n_fft, self.n_mels
        n_mels_pad, w_fused = self.n_mels_pad, self.w_fused

        # flatten (B, n_frames) -> M rows; pick an adaptive tile to minimise
        # both grid-step overhead (big tiles) and padding waste (small M).
        M = B * n_frames
        n_tiles = -(-M // self.tile_m)                    # cdiv
        TM = max(8, _round_up(-(-M // n_tiles), 8))       # <= tile_m, multiple of 8
        M_pad = TM * n_tiles
        frames_flat = frames.reshape(M, n_fft)
        if M_pad != M:
            frames_flat = jnp.pad(frames_flat, ((0, M_pad - M), (0, 0)))

        out = pl.pallas_call(
            melspec_kernel,
            out_shape=jax.ShapeDtypeStruct((M_pad, n_mels_pad), jnp.float32),
            grid_spec=pltpu.PrefetchScalarGridSpec(
                num_scalar_prefetch=0,
                grid=(n_tiles,),
                in_specs=[
                    pl.BlockSpec((TM, n_fft), lambda i: (i, 0)),
                    pl.BlockSpec((n_fft, w_fused), lambda i: (0, 0)),       # resident
                    pl.BlockSpec((w_fused, n_mels_pad), lambda i: (0, 0)),  # resident
                ],
                out_specs=pl.BlockSpec((TM, n_mels_pad), lambda i: (i, 0)),
            ),
            compiler_params=pltpu.CompilerParams(
                dimension_semantics=("parallel",),
            ),
        )(frames_flat, self.dft, self.fb)

        # un-pad, restore (B, n_mels, n_frames) layout, then mean-over-time subtract
        mel = out[:M, :n_mels].reshape(B, n_frames, n_mels)
        mel = jnp.transpose(mel, (0, 2, 1))                 # (B, n_mels, n_frames)
        mel = mel - jnp.mean(mel, axis=-1, keepdims=True)   # mean over TRUE frame count
        return mel


if __name__ == "__main__":
    key = jax.random.PRNGKey(0)
    B, T = 2, 1600                      # 1600 samples -> 1600//160 + 1 = 11 frames
    x = jax.random.normal(key, (B, T), dtype=jnp.float32)

    model = Wave2MelSpecPreprocess()
    y = model(x)
    jax.block_until_ready(y)
    assert y.shape == (B, model.n_mels, T // model.hop_length + 1)
    assert y.dtype == jnp.float32
    print("KERNEL_OK")
</pallas_src>

<mosaic_0001>
module attributes {stable_mosaic.version = 11 : i64} {
  func.func @melspec_kernel(%arg0: i32, %arg1: memref<24x512xf32, #tpu.memory_space<vmem>>, %arg2: memref<512x512xf32, #tpu.memory_space<vmem>>, %arg3: memref<512x128xf32, #tpu.memory_space<vmem>>, %arg4: memref<24x128xf32, #tpu.memory_space<vmem>>) attributes {dimension_semantics = [#tpu.dimension_semantics<parallel>], iteration_bounds = array<i64: 1>, scalar_prefetch = 0 : i64, scratch_operands = 0 : i64, tpu.core_type = #tpu.core_type<tc>, window_params = [{transform_indices = @transform_0, window_bounds = array<i64: 24, 512>}, {pipeline_mode = #tpu.pipeline_mode<synchronous>, transform_indices = @transform_1, window_bounds = array<i64: 512, 512>}, {pipeline_mode = #tpu.pipeline_mode<synchronous>, transform_indices = @transform_2, window_bounds = array<i64: 512, 128>}, {transform_indices = @transform_3, window_bounds = array<i64: 24, 128>}]} {
    %c0 = arith.constant 0 : index
    %c0_0 = arith.constant 0 : index
    %0 = vector.load %arg1[%c0, %c0_0] : memref<24x512xf32, #tpu.memory_space<vmem>>, vector<24x512xf32>
    %c0_1 = arith.constant 0 : index
    %c0_2 = arith.constant 0 : index
    %1 = vector.load %arg2[%c0_1, %c0_2] : memref<512x512xf32, #tpu.memory_space<vmem>>, vector<512x512xf32>
    %cst = arith.constant dense<0.000000e+00> : vector<24x512xf32>
    %2 = tpu.matmul %0, %1, %cst {dimension_numbers = #tpu.dot_dimension_numbers<[1], [0], [0], [1], [0, 0, 1, 1], [], []>} : vector<24x512xf32>, vector<512x512xf32>, vector<24x512xf32> -> vector<24x512xf32>
    %3 = arith.mulf %2, %2 : vector<24x512xf32>
    %c0_3 = arith.constant 0 : index
    %c0_4 = arith.constant 0 : index
    %4 = vector.load %arg3[%c0_3, %c0_4] : memref<512x128xf32, #tpu.memory_space<vmem>>, vector<512x128xf32>
    %cst_5 = arith.constant dense<0.000000e+00> : vector<24x128xf32>
    %5 = tpu.matmul %3, %4, %cst_5 {dimension_numbers = #tpu.dot_dimension_numbers<[1], [0], [0], [1], [0, 0, 1, 1], [], []>} : vector<24x512xf32>, vector<512x128xf32>, vector<24x128xf32> -> vector<24x128xf32>
    %c0_6 = arith.constant 0 : index
    %c0_7 = arith.constant 0 : index
    %6 = vector.load %arg4[%c0_6, %c0_7] : memref<24x128xf32, #tpu.memory_space<vmem>>, vector<24x128xf32>
    tpu.vector_store %arg4[%c0_6, %c0_7], %5 {strides = array<i32>} : memref<24x128xf32, #tpu.memory_space<vmem>>, vector<24x128xf32>,
    return
  }
  func.func @transform_0(%arg0: i32) -> (i32, i32) {
    %c0_i32 = arith.constant 0 : i32
    %c0_i32_0 = arith.constant 0 : i32
    return %arg0, %c0_i32 : i32, i32
  }
  func.func @transform_1(%arg0: i32) -> (i32, i32) {
    %c0_i32 = arith.constant 0 : i32
    %c0_i32_0 = arith.constant 0 : i32
    %c0_i32_1 = arith.constant 0 : i32
    return %c0_i32, %c0_i32_0 : i32, i32
  }
  func.func @transform_2(%arg0: i32) -> (i32, i32) {
    %c0_i32 = arith.constant 0 : i32
    %c0_i32_0 = arith.constant 0 : i32
    %c0_i32_1 = arith.constant 0 : i32
    return %c0_i32, %c0_i32_0 : i32, i32
  }
  func.func @transform_3(%arg0: i32) -> (i32, i32) {
    %c0_i32 = arith.constant 0 : i32
    %c0_i32_0 = arith.constant 0 : i32
    return %arg0, %c0_i32 : i32, i32
  }
}

</mosaic_0001>

<llo_original>
// kernel: tpu_custom_call.1
$region0: #{tpu_custom_call.1}
  #allocation0 [shape = 'u32[]', space=smem, size = 0x4, offset = 0x4, fixed_abs, tag = 'smem constant byte address 0x4 - core index']
  #allocation1 [shape = 'u32[144,128]{1,0:T(1,128)}', space=vmem, size = 0x12000, scoped, tag = 'internal scratch']
  %s0 = inlined_call_operand.hbm [shape: f32[24,512], index: 0, kind: input, shape index: {}]
  %s1 = inlined_call_operand.hbm [shape: f32[512,512], index: 1, kind: input, shape index: {}]
  %s2 = inlined_call_operand.hbm [shape: f32[512,128], index: 2, kind: input, shape index: {}]
  %s3 = inlined_call_operand.hbm [shape: f32[24,128], index: 3, kind: output, shape index: {}]
  %s4 = sld [smem:[#allocation0]]
  $region34: #{tpu_custom_call.1} parent=0
    _
  %s6 = ssub.s32 1, %s4
  %s7 = scalar_select 0, %s6, %s4
  $region1: #{tpu_custom_call.1} parent=0
    #allocation2 [shape = 'u8[49152]{0}', space=vmem, size = 0xc000, scoped, tag = 'input window, operand 0, single buffered']
    #allocation3 [shape = 's32[1]{0}', space=sflag, size = 0x4, scoped, tag = 'scoped memory for tpu_custom_call.1']
    #allocation4 [shape = 's32[1]{0}', space=sflag, size = 0x4, scoped, tag = 'scoped memory for tpu_custom_call.1']
    #allocation5 [shape = 'u8[1048576]{0}', space=vmem, size = 0x100000, scoped, tag = 'input window, operand 1, single buffered']
    #allocation6 [shape = 's32[1]{0}', space=sflag, size = 0x4, scoped, tag = 'scoped memory for tpu_custom_call.1']
    #allocation7 [shape = 'u8[262144]{0}', space=vmem, size = 0x40000, scoped, tag = 'input window, operand 2, single buffered']
    #allocation8 [shape = 'u8[12288]{0}', space=vmem, size = 0x3000, scoped, tag = 'output window, operand 0, single buffered']
    %8 = vsyncpa [#allocation3], 0
    %9 = vsyncpa [#allocation6], 0
    %10 = vsyncpa [#allocation4], 0
    // Predicated region
    $region2: #{tpu_custom_call.1} parent=1 // pred_check
      _
    $region3: #{tpu_custom_call.1} parent=1 // pred_check_branch
      %12 = sbr.rel (0) target = $region5
    $region4: #{tpu_custom_call.1} parent=1 // pred_region
      %s14 = ssub.s32 1536, 1536
      %15 = vsyncadd [#allocation3], %s14
      %s16 = sshll.u32 [#allocation2], 4
      %s17 = int_to_ptr.vmem [resolvable:$true] %s16
      %22 = dma.hbm_to_vmem [thread:$0]  %s0, 1536, %s17, [#allocation3], 512, 512, 32
    $region5: #{tpu_custom_call.1} parent=1 // pred_fallthru
      _
    // Predicated region
    $region6: #{tpu_custom_call.1} parent=1 // pred_check
      _
    $region7: #{tpu_custom_call.1} parent=1 // pred_check_branch
      %24 = sbr.rel (0) target = $region9
    $region8: #{tpu_custom_call.1} parent=1 // pred_region
      %s26 = ssub.s32 32768, 32768
      %27 = vsyncadd [#allocation6], %s26
      %s28 = sshll.u32 [#allocation5], 4
      %s29 = int_to_ptr.vmem [resolvable:$true] %s28
      %34 = dma.hbm_to_vmem [thread:$0]  %s1, 32768, %s29, [#allocation6], 512, 512, 32
    $region9: #{tpu_custom_call.1} parent=1 // pred_fallthru
      _
    // Predicated region
    $region10: #{tpu_custom_call.1} parent=1 // pred_check
      _
    $region11: #{tpu_custom_call.1} parent=1 // pred_check_branch
      %36 = sbr.rel (0) target = $region13
    $region12: #{tpu_custom_call.1} parent=1 // pred_region
      %s38 = ssub.s32 8192, 8192
      %39 = vsyncadd [#allocation6], %s38
      %s40 = sshll.u32 [#allocation7], 4
      %s41 = int_to_ptr.vmem [resolvable:$true] %s40
      %46 = dma.hbm_to_vmem [thread:$0]  %s2, 8192, %s41, [#allocation6], 128, 128, 8
    $region13: #{tpu_custom_call.1} parent=1 // pred_fallthru
      _
    // Predicated region
    $region14: #{tpu_custom_call.1} parent=1 // pred_check
      _
    $region15: #{tpu_custom_call.1} parent=1 // pred_check_branch
      %48 = sbr.rel (0) target = $region17
    $region16: #{tpu_custom_call.1} parent=1 // pred_region
      %49 = dma.done [#allocation3], 1536
    $region17: #{tpu_custom_call.1} parent=1 // pred_fallthru
      _
    // Predicated region
    $region18: #{tpu_custom_call.1} parent=1 // pred_check
      _
    $region19: #{tpu_custom_call.1} parent=1 // pred_check_branch
      %51 = sbr.rel (0) target = $region21
    $region20: #{tpu_custom_call.1} parent=1 // pred_region
      %52 = dma.done [#allocation6], 32768
    $region21: #{tpu_custom_call.1} parent=1 // pred_fallthru
      _
    // Predicated region
    $region22: #{tpu_custom_call.1} parent=1 // pred_check
      _
    $region23: #{tpu_custom_call.1} parent=1 // pred_check_branch
      %54 = sbr.rel (0) target = $region25
    $region24: #{tpu_custom_call.1} parent=1 // pred_region
      %55 = dma.done [#allocation6], 8192
    $region25: #{tpu_custom_call.1} parent=1 // pred_fallthru
      _
    %v56 = vld [vmem:[#allocation2] sm:$0xff]
    %v57 = vld [vmem:[#allocation2 + $0x8] sm:$0xff]
    %v58 = vld [vmem:[#allocation2 + $0x10] sm:$0xff]
    %v59 = vld [vmem:[#allocation2 + $0x18] sm:$0xff]
    %v60 = vld [vmem:[#allocation2 + $0x20] sm:$0xff]
    %v61 = vld [vmem:[#allocation2 + $0x28] sm:$0xff]
    %v62 = vld [vmem:[#allocation2 + $0x30] sm:$0xff]
    %v63 = vld [vmem:[#allocation2 + $0x38] sm:$0xff]
    %v64 = vld [vmem:[#allocation2 + $0x40] sm:$0xff]
    %v65 = vld [vmem:[#allocation2 + $0x48] sm:$0xff]
    %v66 = vld [vmem:[#allocation2 + $0x50] sm:$0xff]
    %v67 = vld [vmem:[#allocation2 + $0x58] sm:$0xff]
    %v68 = vld [vmem:[#allocation5] sm:$0xff]
    %v69 = vld [vmem:[#allocation5 + $0x8] sm:$0xff]
    %v70 = vld [vmem:[#allocation5 + $0x10] sm:$0xff]
    %v71 = vld [vmem:[#allocation5 + $0x18] sm:$0xff]
    %v72 = vld [vmem:[#allocation5 + $0x20] sm:$0xff]
    %v73 = vld [vmem:[#allocation5 + $0x28] sm:$0xff]
    %v74 = vld [vmem:[#allocation5 + $0x30] sm:$0xff]
    %v75 = vld [vmem:[#allocation5 + $0x38] sm:$0xff]
    %v76 = vld [vmem:[#allocation5 + $0x40] sm:$0xff]
    %v77 = vld [vmem:[#allocation5 + $0x48] sm:$0xff]
    %v78 = vld [vmem:[#allocation5 + $0x50] sm:$0xff]
    %v79 = vld [vmem:[#allocation5 + $0x58] sm:$0xff]
    %v80 = vld [vmem:[#allocation5 + $0x60] sm:$0xff]
    %v81 = vld [vmem:[#allocation5 + $0x68] sm:$0xff]
    %v82 = vld [vmem:[#allocation5 + $0x70] sm:$0xff]
    %v83 = vld [vmem:[#allocation5 + $0x78] sm:$0xff]
    %v84 = vld [vmem:[#allocation5 + $0x80] sm:$0xff]
    %v85 = vld [vmem:[#allocation5 + $0x88] sm:$0xff]
    %v86 = vld [vmem:[#allocation5 + $0x90] sm:$0xff]
    %v87 = vld [vmem:[#allocation5 + $0x98] sm:$0xff]
    %v88 = vld [vmem:[#allocation5 + $0xa0] sm:$0xff]
    %v89 = vld [vmem:[#allocation5 + $0xa8] sm:$0xff]
    %v90 = vld [vmem:[#allocation5 + $0xb0] sm:$0xff]
    %v91 = vld [vmem:[#allocation5 + $0xb8] sm:$0xff]
    %v92 = vld [vmem:[#allocation5 + $0xc0] sm:$0xff]
    %v93 = vld [vmem:[#allocation5 + $0xc8] sm:$0xff]
    %v94 = vld [vmem:[#allocation5 + $0xd0] sm:$0xff]
    %v95 = vld [vmem:[#allocation5 + $0xd8] sm:$0xff]
    %v96 = vld [vmem:[#allocation5 + $0xe0] sm:$0xff]
    %v97 = vld [vmem:[#allocation5 + $0xe8] sm:$0xff]
    %v98 = vld [vmem:[#allocation5 + $0xf0] sm:$0xff]
    %v99 = vld [vmem:[#allocation5 + $0xf8] sm:$0xff]
    %v100 = vld [vmem:[#allocation5 + $0x100] sm:$0xff]
    %v101 = vld [vmem:[#allocation5 + $0x108] sm:$0xff]
    %v102 = vld [vmem:[#allocation5 + $0x110] sm:$0xff]
    %v103 = vld [vmem:[#allocation5 + $0x118] sm:$0xff]
    %v104 = vld [vmem:[#allocation5 + $0x120] sm:$0xff]
    %v105 = vld [vmem:[#allocation5 + $0x128] sm:$0xff]
    %v106 = vld [vmem:[#allocation5 + $0x130] sm:$0xff]
    %v107 = vld [vmem:[#allocation5 + $0x138] sm:$0xff]
    %v108 = vld [vmem:[#allocation5 + $0x140] sm:$0xff]
    %v109 = vld [vmem:[#allocation5 + $0x148] sm:$0xff]
    %v110 = vld [vmem:[#allocation5 + $0x150] sm:$0xff]
    %v111 = vld [vmem:[#allocation5 + $0x158] sm:$0xff]
    %v112 = vld [vmem:[#allocation5 + $0x160] sm:$0xff]
    %v113 = vld [vmem:[#allocation5 + $0x168] sm:$0xff]
    %v114 = vld [vmem:[#allocation5 + $0x170] sm:$0xff]
    %v115 = vld [vmem:[#allocation5 + $0x178] sm:$0xff]
    %v116 = vld [vmem:[#allocation5 + $0x180] sm:$0xff]
    %v117 = vld [vmem:[#allocation5 + $0x188] sm:$0xff]
    %v118 = vld [vmem:[#allocation5 + $0x190] sm:$0xff]
    %v119 = vld [vmem:[#allocation5 + $0x198] sm:$0xff]
    %v120 = vld [vmem:[#allocation5 + $0x1a0] sm:$0xff]
    %v121 = vld [vmem:[#allocation5 + $0x1a8] sm:$0xff]
    %v122 = vld [vmem:[#allocation5 + $0x1b0] sm:$0xff]
    %v123 = vld [vmem:[#allocation5 + $0x1b8] sm:$0xff]
    %v124 = vld [vmem:[#allocation5 + $0x1c0] sm:$0xff]
    %v125 = vld [vmem:[#allocation5 + $0x1c8] sm:$0xff]
    %v126 = vld [vmem:[#allocation5 + $0x1d0] sm:$0xff]
    %v127 = vld [vmem:[#allocation5 + $0x1d8] sm:$0xff]
    %v128 = vld [vmem:[#allocation5 + $0x1e0] sm:$0xff]
    %v129 = vld [vmem:[#allocation5 + $0x1e8] sm:$0xff]
    %v130 = vld [vmem:[#allocation5 + $0x1f0] sm:$0xff]
    %v131 = vld [vmem:[#allocation5 + $0x1f8] sm:$0xff]
    %v132 = vld [vmem:[#allocation5 + $0x200] sm:$0xff]
    %v133 = vld [vmem:[#allocation5 + $0x208] sm:$0xff]
    %v134 = vld [vmem:[#allocation5 + $0x210] sm:$0xff]
    %v135 = vld [vmem:[#allocation5 + $0x218] sm:$0xff]
    %v136 = vld [vmem:[#allocation5 + $0x220] sm:$0xff]
    %v137 = vld [vmem:[#allocation5 + $0x228] sm:$0xff]
    %v138 = vld [vmem:[#allocation5 + $0x230] sm:$0xff]
    %v139 = vld [vmem:[#allocation5 + $0x238] sm:$0xff]
    %v140 = vld [vmem:[#allocation5 + $0x240] sm:$0xff]
    %v141 = vld [vmem:[#allocation5 + $0x248] sm:$0xff]
    %v142 = vld [vmem:[#allocation5 + $0x250] sm:$0xff]
    %v143 = vld [vmem:[#allocation5 + $0x258] sm:$0xff]
    %v144 = vld [vmem:[#allocation5 + $0x260] sm:$0xff]
    %v145 = vld [vmem:[#allocation5 + $0x268] sm:$0xff]
    %v146 = vld [vmem:[#allocation5 + $0x270] sm:$0xff]
    %v147 = vld [vmem:[#allocation5 + $0x278] sm:$0xff]
    %v148 = vld [vmem:[#allocation5 + $0x280] sm:$0xff]
    %v149 = vld [vmem:[#allocation5 + $0x288] sm:$0xff]
    %v150 = vld [vmem:[#allocation5 + $0x290] sm:$0xff]
    %v151 = vld [vmem:[#allocation5 + $0x298] sm:$0xff]
    %v152 = vld [vmem:[#allocation5 + $0x2a0] sm:$0xff]
    %v153 = vld [vmem:[#allocation5 + $0x2a8] sm:$0xff]
    %v154 = vld [vmem:[#allocation5 + $0x2b0] sm:$0xff]
    %v155 = vld [vmem:[#allocation5 + $0x2b8] sm:$0xff]
    %v156 = vld [vmem:[#allocation5 + $0x2c0] sm:$0xff]
    %v157 = vld [vmem:[#allocation5 + $0x2c8] sm:$0xff]
    %v158 = vld [vmem:[#allocation5 + $0x2d0] sm:$0xff]
    %v159 = vld [vmem:[#allocation5 + $0x2d8] sm:$0xff]
    %v160 = vld [vmem:[#allocation5 + $0x2e0] sm:$0xff]
    %v161 = vld [vmem:[#allocation5 + $0x2e8] sm:$0xff]
    %v162 = vld [vmem:[#allocation5 + $0x2f0] sm:$0xff]
    %v163 = vld [vmem:[#allocation5 + $0x2f8] sm:$0xff]
    %v164 = vld [vmem:[#allocation5 + $0x300] sm:$0xff]
    %v165 = vld [vmem:[#allocation5 + $0x308] sm:$0xff]
    %v166 = vld [vmem:[#allocation5 + $0x310] sm:$0xff]
    %v167 = vld [vmem:[#allocation5 + $0x318] sm:$0xff]
    %v168 = vld [vmem:[#allocation5 + $0x320] sm:$0xff]
    %v169 = vld [vmem:[#allocation5 + $0x328] sm:$0xff]
    %v170 = vld [vmem:[#allocation5 + $0x330] sm:$0xff]
    %v171 = vld [vmem:[#allocation5 + $0x338] sm:$0xff]
    %v172 = vld [vmem:[#allocation5 + $0x340] sm:$0xff]
    %v173 = vld [vmem:[#allocation5 + $0x348] sm:$0xff]
    %v174 = vld [vmem:[#allocation5 + $0x350] sm:$0xff]
    %v175 = vld [vmem:[#allocation5 + $0x358] sm:$0xff]
    %v176 = vld [vmem:[#allocation5 + $0x360] sm:$0xff]
    %v177 = vld [vmem:[#allocation5 + $0x368] sm:$0xff]
    %v178 = vld [vmem:[#allocation5 + $0x370] sm:$0xff]
    %v179 = vld [vmem:[#allocation5 + $0x378] sm:$0xff]
    %v180 = vld [vmem:[#allocation5 + $0x380] sm:$0xff]
    %v181 = vld [vmem:[#allocation5 + $0x388] sm:$0xff]
    %v182 = vld [vmem:[#allocation5 + $0x390] sm:$0xff]
    %v183 = vld [vmem:[#allocation5 + $0x398] sm:$0xff]
    %v184 = vld [vmem:[#allocation5 + $0x3a0] sm:$0xff]
    %v185 = vld [vmem:[#allocation5 + $0x3a8] sm:$0xff]
    %v186 = vld [vmem:[#allocation5 + $0x3b0] sm:$0xff]
    %v187 = vld [vmem:[#allocation5 + $0x3b8] sm:$0xff]
    %v188 = vld [vmem:[#allocation5 + $0x3c0] sm:$0xff]
    %v189 = vld [vmem:[#allocation5 + $0x3c8] sm:$0xff]
    %v190 = vld [vmem:[#allocation5 + $0x3d0] sm:$0xff]
    %v191 = vld [vmem:[#allocation5 + $0x3d8] sm:$0xff]
    %v192 = vld [vmem:[#allocation5 + $0x3e0] sm:$0xff]
    %v193 = vld [vmem:[#allocation5 + $0x3e8] sm:$0xff]
    %v194 = vld [vmem:[#allocation5 + $0x3f0] sm:$0xff]
    %v195 = vld [vmem:[#allocation5 + $0x3f8] sm:$0xff]
    %v196 = vld [vmem:[#allocation5 + $0x400] sm:$0xff]
    %v197 = vld [vmem:[#allocation5 + $0x408] sm:$0xff]
    %v198 = vld [vmem:[#allocation5 + $0x410] sm:$0xff]
    %v199 = vld [vmem:[#allocation5 + $0x418] sm:$0xff]
    %v200 = vld [vmem:[#allocation5 + $0x420] sm:$0xff]
    %v201 = vld [vmem:[#allocation5 + $0x428] sm:$0xff]
    %v202 = vld [vmem:[#allocation5 + $0x430] sm:$0xff]
    %v203 = vld [vmem:[#allocation5 + $0x438] sm:$0xff]
    %v204 = vld [vmem:[#allocation5 + $0x440] sm:$0xff]
    %v205 = vld [vmem:[#allocation5 + $0x448] sm:$0xff]
    %v206 = vld [vmem:[#allocation5 + $0x450] sm:$0xff]
    %v207 = vld [vmem:[#allocation5 + $0x458] sm:$0xff]
    %v208 = vld [vmem:[#allocation5 + $0x460] sm:$0xff]
    %v209 = vld [vmem:[#allocation5 + $0x468] sm:$0xff]
    %v210 = vld [vmem:[#allocation5 + $0x470] sm:$0xff]
    %v211 = vld [vmem:[#allocation5 + $0x478] sm:$0xff]
    %v212 = vld [vmem:[#allocation5 + $0x480] sm:$0xff]
    %v213 = vld [vmem:[#allocation5 + $0x488] sm:$0xff]
    %v214 = vld [vmem:[#allocation5 + $0x490] sm:$0xff]
    %v215 = vld [vmem:[#allocation5 + $0x498] sm:$0xff]
    %v216 = vld [vmem:[#allocation5 + $0x4a0] sm:$0xff]
    %v217 = vld [vmem:[#allocation5 + $0x4a8] sm:$0xff]
    %v218 = vld [vmem:[#allocation5 + $0x4b0] sm:$0xff]
    %v219 = vld [vmem:[#allocation5 + $0x4b8] sm:$0xff]
    %v220 = vld [vmem:[#allocation5 + $0x4c0] sm:$0xff]
    %v221 = vld [vmem:[#allocation5 + $0x4c8] sm:$0xff]
    %v222 = vld [vmem:[#allocation5 + $0x4d0] sm:$0xff]
    %v223 = vld [vmem:[#allocation5 + $0x4d8] sm:$0xff]
    %v224 = vld [vmem:[#allocation5 + $0x4e0] sm:$0xff]
    %v225 = vld [vmem:[#allocation5 + $0x4e8] sm:$0xff]
    %v226 = vld [vmem:[#allocation5 + $0x4f0] sm:$0xff]
    %v227 = vld [vmem:[#allocation5 + $0x4f8] sm:$0xff]
    %v228 = vld [vmem:[#allocation5 + $0x500] sm:$0xff]
    %v229 = vld [vmem:[#allocation5 + $0x508] sm:$0xff]
    %v230 = vld [vmem:[#allocation5 + $0x510] sm:$0xff]
    %v231 = vld [vmem:[#allocation5 + $0x518] sm:$0xff]
    %v232 = vld [vmem:[#allocation5 + $0x520] sm:$0xff]
    %v233 = vld [vmem:[#allocation5 + $0x528] sm:$0xff]
    %v234 = vld [vmem:[#allocation5 + $0x530] sm:$0xff]
    %v235 = vld [vmem:[#allocation5 + $0x538] sm:$0xff]
    %v236 = vld [vmem:[#allocation5 + $0x540] sm:$0xff]
    %v237 = vld [vmem:[#allocation5 + $0x548] sm:$0xff]
    %v238 = vld [vmem:[#allocation5 + $0x550] sm:$0xff]
    %v239 = vld [vmem:[#allocation5 + $0x558] sm:$0xff]
    %v240 = vld [vmem:[#allocation5 + $0x560] sm:$0xff]
    %v241 = vld [vmem:[#allocation5 + $0x568] sm:$0xff]
    %v242 = vld [vmem:[#allocation5 + $0x570] sm:$0xff]
    %v243 = vld [vmem:[#allocation5 + $0x578] sm:$0xff]
    %v244 = vld [vmem:[#allocation5 + $0x580] sm:$0xff]
    %v245 = vld [vmem:[#allocation5 + $0x588] sm:$0xff]
    %v246 = vld [vmem:[#allocation5 + $0x590] sm:$0xff]
    %v247 = vld [vmem:[#allocation5 + $0x598] sm:$0xff]
    %v248 = vld [vmem:[#allocation5 + $0x5a0] sm:$0xff]
    %v249 = vld [vmem:[#allocation5 + $0x5a8] sm:$0xff]
    %v250 = vld [vmem:[#allocation5 + $0x5b0] sm:$0xff]
    %v251 = vld [vmem:[#allocation5 + $0x5b8] sm:$0xff]
    %v252 = vld [vmem:[#allocation5 + $0x5c0] sm:$0xff]
    %v253 = vld [vmem:[#allocation5 + $0x5c8] sm:$0xff]
    %v254 = vld [vmem:[#allocation5 + $0x5d0] sm:$0xff]
    %v255 = vld [vmem:[#allocation5 + $0x5d8] sm:$0xff]
    %v256 = vld [vmem:[#allocation5 + $0x5e0] sm:$0xff]
    %v257 = vld [vmem:[#allocation5 + $0x5e8] sm:$0xff]
    %v258 = vld [vmem:[#allocation5 + $0x5f0] sm:$0xff]
    %v259 = vld [vmem:[#allocation5 + $0x5f8] sm:$0xff]
    %v260 = vld [vmem:[#allocation5 + $0x600] sm:$0xff]
    %v261 = vld [vmem:[#allocation5 + $0x608] sm:$0xff]
    %v262 = vld [vmem:[#allocation5 + $0x610] sm:$0xff]
    %v263 = vld [vmem:[#allocation5 + $0x618] sm:$0xff]
    %v264 = vld [vmem:[#allocation5 + $0x620] sm:$0xff]
    %v265 = vld [vmem:[#allocation5 + $0x628] sm:$0xff]
    %v266 = vld [vmem:[#allocation5 + $0x630] sm:$0xff]
    %v267 = vld [vmem:[#allocation5 + $0x638] sm:$0xff]
    %v268 = vld [vmem:[#allocation5 + $0x640] sm:$0xff]
    %v269 = vld [vmem:[#allocation5 + $0x648] sm:$0xff]
    %v270 = vld [vmem:[#allocation5 + $0x650] sm:$0xff]
    %v271 = vld [vmem:[#allocation5 + $0x658] sm:$0xff]
    %v272 = vld [vmem:[#allocation5 + $0x660] sm:$0xff]
    %v273 = vld [vmem:[#allocation5 + $0x668] sm:$0xff]
    %v274 = vld [vmem:[#allocation5 + $0x670] sm:$0xff]
    %v275 = vld [vmem:[#allocation5 + $0x678] sm:$0xff]
    %v276 = vld [vmem:[#allocation5 + $0x680] sm:$0xff]
    %v277 = vld [vmem:[#allocation5 + $0x688] sm:$0xff]
    %v278 = vld [vmem:[#allocation5 + $0x690] sm:$0xff]
    %v279 = vld [vmem:[#allocation5 + $0x698] sm:$0xff]
    %v280 = vld [vmem:[#allocation5 + $0x6a0] sm:$0xff]
    %v281 = vld [vmem:[#allocation5 + $0x6a8] sm:$0xff]
    %v282 = vld [vmem:[#allocation5 + $0x6b0] sm:$0xff]
    %v283 = vld [vmem:[#allocation5 + $0x6b8] sm:$0xff]
    %v284 = vld [vmem:[#allocation5 + $0x6c0] sm:$0xff]
    %v285 = vld [vmem:[#allocation5 + $0x6c8] sm:$0xff]
    %v286 = vld [vmem:[#allocation5 + $0x6d0] sm:$0xff]
    %v287 = vld [vmem:[#allocation5 + $0x6d8] sm:$0xff]
    %v288 = vld [vmem:[#allocation5 + $0x6e0] sm:$0xff]
    %v289 = vld [vmem:[#allocation5 + $0x6e8] sm:$0xff]
    %v290 = vld [vmem:[#allocation5 + $0x6f0] sm:$0xff]
    %v291 = vld [vmem:[#allocation5 + $0x6f8] sm:$0xff]
    %v292 = vld [vmem:[#allocation5 + $0x700] sm:$0xff]
    %v293 = vld [vmem:[#allocation5 + $0x708] sm:$0xff]
    %v294 = vld [vmem:[#allocation5 + $0x710] sm:$0xff]
    %v295 = vld [vmem:[#allocation5 + $0x718] sm:$0xff]
    %v296 = vld [vmem:[#allocation5 + $0x720] sm:$0xff]
    %v297 = vld [vmem:[#allocation5 + $0x728] sm:$0xff]
    %v298 = vld [vmem:[#allocation5 + $0x730] sm:$0xff]
    %v299 = vld [vmem:[#allocation5 + $0x738] sm:$0xff]
    %v300 = vld [vmem:[#allocation5 + $0x740] sm:$0xff]
    %v301 = vld [vmem:[#allocation5 + $0x748] sm:$0xff]
    %v302 = vld [vmem:[#allocation5 + $0x750] sm:$0xff]
    %v303 = vld [vmem:[#allocation5 + $0x758] sm:$0xff]
    %v304 = vld [vmem:[#allocation5 + $0x760] sm:$0xff]
    %v305 = vld [vmem:[#allocation5 + $0x768] sm:$0xff]
    %v306 = vld [vmem:[#allocation5 + $0x770] sm:$0xff]
    %v307 = vld [vmem:[#allocation5 + $0x778] sm:$0xff]
    %v308 = vld [vmem:[#allocation5 + $0x780] sm:$0xff]
    %v309 = vld [vmem:[#allocation5 + $0x788] sm:$0xff]
    %v310 = vld [vmem:[#allocation5 + $0x790] sm:$0xff]
    %v311 = vld [vmem:[#allocation5 + $0x798] sm:$0xff]
    %v312 = vld [vmem:[#allocation5 + $0x7a0] sm:$0xff]
    %v313 = vld [vmem:[#allocation5 + $0x7a8] sm:$0xff]
    %v314 = vld [vmem:[#allocation5 + $0x7b0] sm:$0xff]
    %v315 = vld [vmem:[#allocation5 + $0x7b8] sm:$0xff]
    %v316 = vld [vmem:[#allocation5 + $0x7c0] sm:$0xff]
    %v317 = vld [vmem:[#allocation5 + $0x7c8] sm:$0xff]
    %v318 = vld [vmem:[#allocation5 + $0x7d0] sm:$0xff]
    %v319 = vld [vmem:[#allocation5 + $0x7d8] sm:$0xff]
    %v320 = vld [vmem:[#allocation5 + $0x7e0] sm:$0xff]
    %v321 = vld [vmem:[#allocation5 + $0x7e8] sm:$0xff]
    %v322 = vld [vmem:[#allocation5 + $0x7f0] sm:$0xff]
    %v323 = vld [vmem:[#allocation5 + $0x7f8] sm:$0xff]
    %324 = vmatprep.subr.mxu0 %v69
    %325 = vmatpush1.msra.mxu0 %v68
    %326 = vmatprep.subr.mxu0 %v73
    %327 = vmatpush1.msra.mxu0 %v72
    %328 = vmatprep.subr.mxu0 %v77
    %329 = vmatpush1.msra.mxu0 %v76
    %330 = vmatprep.subr.mxu0 %v81
    %331 = vmatpush1.msra.mxu0 %v80
    %332 = vmatprep.subr.mxu0 %v85
    %333 = vmatpush1.msra.mxu0 %v84
    %334 = vmatprep.subr.mxu0 %v89
    %335 = vmatpush1.msra.mxu0 %v88
    %336 = vmatprep.subr.mxu0 %v93
    %337 = vmatpush1.msra.mxu0 %v92
    %338 = vmatprep.subr.mxu0 %v97
    %339 = vmatpush1.msra.mxu0 %v96
    %340 = vmatprep.subr.mxu0 %v101
    %341 = vmatpush1.msra.mxu0 %v100
    %342 = vmatprep.subr.mxu0 %v105
    %343 = vmatpush1.msra.mxu0 %v104
    %344 = vmatprep.subr.mxu0 %v109
    %345 = vmatpush1.msra.mxu0 %v108
    %346 = vmatprep.subr.mxu0 %v113
    %347 = vmatpush1.msra.mxu0 %v112
    %348 = vmatprep.subr.mxu0 %v117
    %349 = vmatpush1.msra.mxu0 %v116
    %350 = vmatprep.subr.mxu0 %v121
    %351 = vmatpush1.msra.mxu0 %v120
    %352 = vmatprep.subr.mxu0 %v125
    %353 = vmatpush1.msra.mxu0 %v124
    %354 = vmatprep.subr.mxu0 %v129
    %355 = vmatpush1.msra.mxu0 %v128
    %356 = vmatprep.subr.mxu0 %v133
    %357 = vmatpush1.msra.mxu0 %v132
    %358 = vmatprep.subr.mxu0 %v137
    %359 = vmatpush1.msra.mxu0 %v136
    %360 = vmatprep.subr.mxu0 %v141
    %361 = vmatpush1.msra.mxu0 %v140
    %362 = vmatprep.subr.mxu0 %v145
    %363 = vmatpush1.msra.mxu0 %v144
    %364 = vmatprep.subr.mxu0 %v149
    %365 = vmatpush1.msra.mxu0 %v148
    %366 = vmatprep.subr.mxu0 %v153
    %367 = vmatpush1.msra.mxu0 %v152
    %368 = vmatprep.subr.mxu0 %v157
    %369 = vmatpush1.msra.mxu0 %v156
    %370 = vmatprep.subr.mxu0 %v161
    %371 = vmatpush1.msra.mxu0 %v160
    %372 = vmatprep.subr.mxu0 %v165
    %373 = vmatpush1.msra.mxu0 %v164
    %374 = vmatprep.subr.mxu0 %v169
    %375 = vmatpush1.msra.mxu0 %v168
    %376 = vmatprep.subr.mxu0 %v173
    %377 = vmatpush1.msra.mxu0 %v172
    %378 = vmatprep.subr.mxu0 %v177
    %379 = vmatpush1.msra.mxu0 %v176
    %380 = vmatprep.subr.mxu0 %v181
    %381 = vmatpush1.msra.mxu0 %v180
    %382 = vmatprep.subr.mxu0 %v185
    %383 = vmatpush1.msra.mxu0 %v184
    %384 = vmatprep.subr.mxu0 %v189
    %385 = vmatpush1.msra.mxu0 %v188
    %386 = vmatprep.subr.mxu0 %v193
    %387 = vmatpush1.msra.mxu0 %v192
    %388 = vmatprep.mubr.f32.mxu0 %v57
    %389 = vmatmul.mubr.f32.gmra.mrb[0].mxu0 %v56
    %v390 = vpop.f32.mrb[0].mxu0
    %v391 = vadd.f32 0.0, %v390
    %v392 = vpop.f32.mrb[0].mxu0
    %v393 = vadd.f32 0.0, %v392
    %394 = vmatprep.mubr.f32.mxu0 %v61
    %395 = vmatmul.mubr.f32.gmra.mrb[0].mxu0 %v60
    %v396 = vpop.f32.mrb[0].mxu0
    %v397 = vadd.f32 0.0, %v396
    %v398 = vpop.f32.mrb[0].mxu0
    %v399 = vadd.f32 0.0, %v398
    %400 = vmatprep.mubr.f32.mxu0 %v65
    %401 = vmatmul.mubr.f32.gmra.mrb[0].mxu0 %v64
    %v402 = vpop.f32.mrb[0].mxu0
    %v403 = vadd.f32 0.0, %v402
    %v404 = vpop.f32.mrb[0].mxu0
    %v405 = vadd.f32 0.0, %v404
    %406 = vdwg.mxu0
    %407 = vmatprep.subr.mxu0 %v197
    %408 = vmatpush1.msra.mxu0 %v196
    %409 = vmatprep.subr.mxu0 %v201
    %410 = vmatpush1.msra.mxu0 %v200
    %411 = vmatprep.subr.mxu0 %v205
    %412 = vmatpush1.msra.mxu0 %v204
    %413 = vmatprep.subr.mxu0 %v209
    %414 = vmatpush1.msra.mxu0 %v208
    %415 = vmatprep.subr.mxu0 %v213
    %416 = vmatpush1.msra.mxu0 %v212
    %417 = vmatprep.subr.mxu0 %v217
    %418 = vmatpush1.msra.mxu0 %v216
    %419 = vmatprep.subr.mxu0 %v221
    %420 = vmatpush1.msra.mxu0 %v220
    %421 = vmatprep.subr.mxu0 %v225
    %422 = vmatpush1.msra.mxu0 %v224
    %423 = vmatprep.subr.mxu0 %v229
    %424 = vmatpush1.msra.mxu0 %v228
    %425 = vmatprep.subr.mxu0 %v233
    %426 = vmatpush1.msra.mxu0 %v232
    %427 = vmatprep.subr.mxu0 %v237
    %428 = vmatpush1.msra.mxu0 %v236
    %429 = vmatprep.subr.mxu0 %v241
    %430 = vmatpush1.msra.mxu0 %v240
    %431 = vmatprep.subr.mxu0 %v245
    %432 = vmatpush1.msra.mxu0 %v244
    %433 = vmatprep.subr.mxu0 %v249
    %434 = vmatpush1.msra.mxu0 %v248
    %435 = vmatprep.subr.mxu0 %v253
    %436 = vmatpush1.msra.mxu0 %v252
    %437 = vmatprep.subr.mxu0 %v257
    %438 = vmatpush1.msra.mxu0 %v256
    %439 = vmatprep.subr.mxu0 %v261
    %440 = vmatpush1.msra.mxu0 %v260
    %441 = vmatprep.subr.mxu0 %v265
    %442 = vmatpush1.msra.mxu0 %v264
    %443 = vmatprep.subr.mxu0 %v269
    %444 = vmatpush1.msra.mxu0 %v268
    %445 = vmatprep.subr.mxu0 %v273
    %446 = vmatpush1.msra.mxu0 %v272
    %447 = vmatprep.subr.mxu0 %v277
    %448 = vmatpush1.msra.mxu0 %v276
    %449 = vmatprep.subr.mxu0 %v281
    %450 = vmatpush1.msra.mxu0 %v280
    %451 = vmatprep.subr.mxu0 %v285
    %452 = vmatpush1.msra.mxu0 %v284
    %453 = vmatprep.subr.mxu0 %v289
    %454 = vmatpush1.msra.mxu0 %v288
    %455 = vmatprep.subr.mxu0 %v293
    %456 = vmatpush1.msra.mxu0 %v292
    %457 = vmatprep.subr.mxu0 %v297
    %458 = vmatpush1.msra.mxu0 %v296
    %459 = vmatprep.subr.mxu0 %v301
    %460 = vmatpush1.msra.mxu0 %v300
    %461 = vmatprep.subr.mxu0 %v305
    %462 = vmatpush1.msra.mxu0 %v304
    %463 = vmatprep.subr.mxu0 %v309
    %464 = vmatpush1.msra.mxu0 %v308
    %465 = vmatprep.subr.mxu0 %v313
    %466 = vmatpush1.msra.mxu0 %v312
    %467 = vmatprep.subr.mxu0 %v317
    %468 = vmatpush1.msra.mxu0 %v316
    %469 = vmatprep.subr.mxu0 %v321
    %470 = vmatpush1.msra.mxu0 %v320
    %471 = vmatprep.mubr.f32.mxu0 %v59
    %472 = vmatmul.mubr.f32.gmra.mrb[0].mxu0 %v58
    %v473 = vpop.f32.mrb[0].mxu0
    %v474 = vadd.f32 %v391, %v473
    %v475 = vpop.f32.mrb[0].mxu0
    %v476 = vadd.f32 %v393, %v475
    %477 = vmatprep.mubr.f32.mxu0 %v63
    %478 = vmatmul.mubr.f32.gmra.mrb[0].mxu0 %v62
    %v479 = vpop.f32.mrb[0].mxu0
    %v480 = vadd.f32 %v397, %v479
    %v481 = vpop.f32.mrb[0].mxu0
    %v482 = vadd.f32 %v399, %v481
    %483 = vmatprep.mubr.f32.mxu0 %v67
    %484 = vmatmul.mubr.f32.gmra.mrb[0].mxu0 %v66
    %v485 = vpop.f32.mrb[0].mxu0
    %v486 = vadd.f32 %v403, %v485
    %v487 = vpop.f32.mrb[0].mxu0
    %v488 = vadd.f32 %v405, %v487
    %489 = vdwg.mxu0
    %490 = vmatprep.subr.mxu0 %v71
    %491 = vmatpush1.msra.mxu0 %v70
    %492 = vmatprep.subr.mxu0 %v75
    %493 = vmatpush1.msra.mxu0 %v74
    %494 = vmatprep.subr.mxu0 %v79
    %495 = vmatpush1.msra.mxu0 %v78
    %496 = vmatprep.subr.mxu0 %v83
    %497 = vmatpush1.msra.mxu0 %v82
    %498 = vmatprep.subr.mxu0 %v87
    %499 = vmatpush1.msra.mxu0 %v86
    %500 = vmatprep.subr.mxu0 %v91
    %501 = vmatpush1.msra.mxu0 %v90
    %502 = vmatprep.subr.mxu0 %v95
    %503 = vmatpush1.msra.mxu0 %v94
    %504 = vmatprep.subr.mxu0 %v99
    %505 = vmatpush1.msra.mxu0 %v98
    %506 = vmatprep.subr.mxu0 %v103
    %507 = vmatpush1.msra.mxu0 %v102
    %508 = vmatprep.subr.mxu0 %v107
    %509 = vmatpush1.msra.mxu0 %v106
    %510 = vmatprep.subr.mxu0 %v111
    %511 = vmatpush1.msra.mxu0 %v110
    %512 = vmatprep.subr.mxu0 %v115
    %513 = vmatpush1.msra.mxu0 %v114
    %514 = vmatprep.subr.mxu0 %v119
    %515 = vmatpush1.msra.mxu0 %v118
    %516 = vmatprep.subr.mxu0 %v123
    %517 = vmatpush1.msra.mxu0 %v122
    %518 = vmatprep.subr.mxu0 %v127
    %519 = vmatpush1.msra.mxu0 %v126
    %520 = vmatprep.subr.mxu0 %v131
    %521 = vmatpush1.msra.mxu0 %v130
    %522 = vmatprep.subr.mxu0 %v135
    %523 = vmatpush1.msra.mxu0 %v134
    %524 = vmatprep.subr.mxu0 %v139
    %525 = vmatpush1.msra.mxu0 %v138
    %526 = vmatprep.subr.mxu0 %v143
    %527 = vmatpush1.msra.mxu0 %v142
    %528 = vmatprep.subr.mxu0 %v147
    %529 = vmatpush1.msra.mxu0 %v146
    %530 = vmatprep.subr.mxu0 %v151
    %531 = vmatpush1.msra.mxu0 %v150
    %532 = vmatprep.subr.mxu0 %v155
    %533 = vmatpush1.msra.mxu0 %v154
    %534 = vmatprep.subr.mxu0 %v159
    %535 = vmatpush1.msra.mxu0 %v158
    %536 = vmatprep.subr.mxu0 %v163
    %537 = vmatpush1.msra.mxu0 %v162
    %538 = vmatprep.subr.mxu0 %v167
    %539 = vmatpush1.msra.mxu0 %v166
    %540 = vmatprep.subr.mxu0 %v171
    %541 = vmatpush1.msra.mxu0 %v170
    %542 = vmatprep.subr.mxu0 %v175
    %543 = vmatpush1.msra.mxu0 %v174
    %544 = vmatprep.subr.mxu0 %v179
    %545 = vmatpush1.msra.mxu0 %v178
    %546 = vmatprep.subr.mxu0 %v183
    %547 = vmatpush1.msra.mxu0 %v182
    %548 = vmatprep.subr.mxu0 %v187
    %549 = vmatpush1.msra.mxu0 %v186
    %550 = vmatprep.subr.mxu0 %v191
    %551 = vmatpush1.msra.mxu0 %v190
    %552 = vmatprep.subr.mxu0 %v195
    %553 = vmatpush1.msra.mxu0 %v194
    %554 = vmatprep.mubr.f32.mxu0 %v57
    %555 = vmatmul.mubr.f32.gmra.mrb[0].mxu0 %v56
    %v556 = vpop.f32.mrb[0].mxu0
    %v557 = vadd.f32 0.0, %v556
    %v558 = vpop.f32.mrb[0].mxu0
    %v559 = vadd.f32 0.0, %v558
    %560 = vmatprep.mubr.f32.mxu0 %v61
    %561 = vmatmul.mubr.f32.gmra.mrb[0].mxu0 %v60
    %v562 = vpop.f32.mrb[0].mxu0
    %v563 = vadd.f32 0.0, %v562
    %v564 = vpop.f32.mrb[0].mxu0
    %v565 = vadd.f32 0.0, %v564
    %566 = vmatprep.mubr.f32.mxu0 %v65
    %567 = vmatmul.mubr.f32.gmra.mrb[0].mxu0 %v64
    %v568 = vpop.f32.mrb[0].mxu0
    %v569 = vadd.f32 0.0, %v568
    %v570 = vpop.f32.mrb[0].mxu0
    %v571 = vadd.f32 0.0, %v570
    %572 = vdwg.mxu0
    %573 = vmatprep.subr.mxu0 %v199
    %574 = vmatpush1.msra.mxu0 %v198
    %575 = vmatprep.subr.mxu0 %v203
    %576 = vmatpush1.msra.mxu0 %v202
    %577 = vmatprep.subr.mxu0 %v207
    %578 = vmatpush1.msra.mxu0 %v206
    %579 = vmatprep.subr.mxu0 %v211
    %580 = vmatpush1.msra.mxu0 %v210
    %581 = vmatprep.subr.mxu0 %v215
    %582 = vmatpush1.msra.mxu0 %v214
    %583 = vmatprep.subr.mxu0 %v219
    %584 = vmatpush1.msra.mxu0 %v218
    %585 = vmatprep.subr.mxu0 %v223
    %586 = vmatpush1.msra.mxu0 %v222
    %587 = vmatprep.subr.mxu0 %v227
    %588 = vmatpush1.msra.mxu0 %v226
    %589 = vmatprep.subr.mxu0 %v231
    %590 = vmatpush1.msra.mxu0 %v230
    %591 = vmatprep.subr.mxu0 %v235
    %592 = vmatpush1.msra.mxu0 %v234
    %593 = vmatprep.subr.mxu0 %v239
    %594 = vmatpush1.msra.mxu0 %v238
    %595 = vmatprep.subr.mxu0 %v243
    %596 = vmatpush1.msra.mxu0 %v242
    %597 = vmatprep.subr.mxu0 %v247
    %598 = vmatpush1.msra.mxu0 %v246
    %599 = vmatprep.subr.mxu0 %v251
    %600 = vmatpush1.msra.mxu0 %v250
    %601 = vmatprep.subr.mxu0 %v255
    %602 = vmatpush1.msra.mxu0 %v254
    %603 = vmatprep.subr.mxu0 %v259
    %604 = vmatpush1.msra.mxu0 %v258
    %605 = vmatprep.subr.mxu0 %v263
    %606 = vmatpush1.msra.mxu0 %v262
    %607 = vmatprep.subr.mxu0 %v267
    %608 = vmatpush1.msra.mxu0 %v266
    %609 = vmatprep.subr.mxu0 %v271
    %610 = vmatpush1.msra.mxu0 %v270
    %611 = vmatprep.subr.mxu0 %v275
    %612 = vmatpush1.msra.mxu0 %v274
    %613 = vmatprep.subr.mxu0 %v279
    %614 = vmatpush1.msra.mxu0 %v278
    %615 = vmatprep.subr.mxu0 %v283
    %616 = vmatpush1.msra.mxu0 %v282
    %617 = vmatprep.subr.mxu0 %v287
    %618 = vmatpush1.msra.mxu0 %v286
    %619 = vmatprep.subr.mxu0 %v291
    %620 = vmatpush1.msra.mxu0 %v290
    %621 = vmatprep.subr.mxu0 %v295
    %622 = vmatpush1.msra.mxu0 %v294
    %623 = vmatprep.subr.mxu0 %v299
    %624 = vmatpush1.msra.mxu0 %v298
    %625 = vmatprep.subr.mxu0 %v303
    %626 = vmatpush1.msra.mxu0 %v302
    %627 = vmatprep.subr.mxu0 %v307
    %628 = vmatpush1.msra.mxu0 %v306
    %629 = vmatprep.subr.mxu0 %v311
    %630 = vmatpush1.msra.mxu0 %v310
    %631 = vmatprep.subr.mxu0 %v315
    %632 = vmatpush1.msra.mxu0 %v314
    %633 = vmatprep.subr.mxu0 %v319
    %634 = vmatpush1.msra.mxu0 %v318
    %635 = vmatprep.subr.mxu0 %v323
    %636 = vmatpush1.msra.mxu0 %v322
    %637 = vmatprep.mubr.f32.mxu0 %v59
    %638 = vmatmul.mubr.f32.gmra.mrb[0].mxu0 %v58
    %v639 = vpop.f32.mrb[0].mxu0
    %v640 = vadd.f32 %v557, %v639
    %v641 = vpop.f32.mrb[0].mxu0
    %v642 = vadd.f32 %v559, %v641
    %643 = vmatprep.mubr.f32.mxu0 %v63
    %644 = vmatmul.mubr.f32.gmra.mrb[0].mxu0 %v62
    %v645 = vpop.f32.mrb[0].mxu0
    %v646 = vadd.f32 %v563, %v645
    %v647 = vpop.f32.mrb[0].mxu0
    %v648 = vadd.f32 %v565, %v647
    %649 = vmatprep.mubr.f32.mxu0 %v67
    %650 = vmatmul.mubr.f32.gmra.mrb[0].mxu0 %v66
    %v651 = vpop.f32.mrb[0].mxu0
    %v652 = vadd.f32 %v569, %v651
    %v653 = vpop.f32.mrb[0].mxu0
    %v654 = vadd.f32 %v571, %v653
    %655 = vdwg.mxu0
    %v656 = vmul.f32 %v474, %v474
    %v657 = vmul.f32 %v476, %v476
    %v658 = vmul.f32 %v640, %v640
    %v659 = vmul.f32 %v642, %v642
    %v660 = vmul.f32 %v480, %v480
    %v661 = vmul.f32 %v482, %v482
    %v662 = vmul.f32 %v646, %v646
    %v663 = vmul.f32 %v648, %v648
    %v664 = vmul.f32 %v486, %v486
    %v665 = vmul.f32 %v488, %v488
    %v666 = vmul.f32 %v652, %v652
    %v667 = vmul.f32 %v654, %v654
    %v668 = vld [vmem:[#allocation7] sm:$0xff]
    %v669 = vld [vmem:[#allocation7 + $0x8] sm:$0xff]
    %v670 = vld [vmem:[#allocation7 + $0x10] sm:$0xff]
    %v671 = vld [vmem:[#allocation7 + $0x18] sm:$0xff]
    %v672 = vld [vmem:[#allocation7 + $0x20] sm:$0xff]
    %v673 = vld [vmem:[#allocation7 + $0x28] sm:$0xff]
    %v674 = vld [vmem:[#allocation7 + $0x30] sm:$0xff]
    %v675 = vld [vmem:[#allocation7 + $0x38] sm:$0xff]
    %v676 = vld [vmem:[#allocation7 + $0x40] sm:$0xff]
    %v677 = vld [vmem:[#allocation7 + $0x48] sm:$0xff]
    %v678 = vld [vmem:[#allocation7 + $0x50] sm:$0xff]
    %v679 = vld [vmem:[#allocation7 + $0x58] sm:$0xff]
    %v680 = vld [vmem:[#allocation7 + $0x60] sm:$0xff]
    %v681 = vld [vmem:[#allocation7 + $0x68] sm:$0xff]
    %v682 = vld [vmem:[#allocation7 + $0x70] sm:$0xff]
    %v683 = vld [vmem:[#allocation7 + $0x78] sm:$0xff]
    %v684 = vld [vmem:[#allocation7 + $0x80] sm:$0xff]
    %v685 = vld [vmem:[#allocation7 + $0x88] sm:$0xff]
    %v686 = vld [vmem:[#allocation7 + $0x90] sm:$0xff]
    %v687 = vld [vmem:[#allocation7 + $0x98] sm:$0xff]
    %v688 = vld [vmem:[#allocation7 + $0xa0] sm:$0xff]
    %v689 = vld [vmem:[#allocation7 + $0xa8] sm:$0xff]
    %v690 = vld [vmem:[#allocation7 + $0xb0] sm:$0xff]
    %v691 = vld [vmem:[#allocation7 + $0xb8] sm:$0xff]
    %v692 = vld [vmem:[#allocation7 + $0xc0] sm:$0xff]
    %v693 = vld [vmem:[#allocation7 + $0xc8] sm:$0xff]
    %v694 = vld [vmem:[#allocation7 + $0xd0] sm:$0xff]
    %v695 = vld [vmem:[#allocation7 + $0xd8] sm:$0xff]
    %v696 = vld [vmem:[#allocation7 + $0xe0] sm:$0xff]
    %v697 = vld [vmem:[#allocation7 + $0xe8] sm:$0xff]
    %v698 = vld [vmem:[#allocation7 + $0xf0] sm:$0xff]
    %v699 = vld [vmem:[#allocation7 + $0xf8] sm:$0xff]
    %v700 = vld [vmem:[#allocation7 + $0x100] sm:$0xff]
    %v701 = vld [vmem:[#allocation7 + $0x108] sm:$0xff]
    %v702 = vld [vmem:[#allocation7 + $0x110] sm:$0xff]
    %v703 = vld [vmem:[#allocation7 + $0x118] sm:$0xff]
    %v704 = vld [vmem:[#allocation7 + $0x120] sm:$0xff]
    %v705 = vld [vmem:[#allocation7 + $0x128] sm:$0xff]
    %v706 = vld [vmem:[#allocation7 + $0x130] sm:$0xff]
    %v707 = vld [vmem:[#allocation7 + $0x138] sm:$0xff]
    %v708 = vld [vmem:[#allocation7 + $0x140] sm:$0xff]
    %v709 = vld [vmem:[#allocation7 + $0x148] sm:$0xff]
    %v710 = vld [vmem:[#allocation7 + $0x150] sm:$0xff]
    %v711 = vld [vmem:[#allocation7 + $0x158] sm:$0xff]
    %v712 = vld [vmem:[#allocation7 + $0x160] sm:$0xff]
    %v713 = vld [vmem:[#allocation7 + $0x168] sm:$0xff]
    %v714 = vld [vmem:[#allocation7 + $0x170] sm:$0xff]
    %v715 = vld [vmem:[#allocation7 + $0x178] sm:$0xff]
    %v716 = vld [vmem:[#allocation7 + $0x180] sm:$0xff]
    %v717 = vld [vmem:[#allocation7 + $0x188] sm:$0xff]
    %v718 = vld [vmem:[#allocation7 + $0x190] sm:$0xff]
    %v719 = vld [vmem:[#allocation7 + $0x198] sm:$0xff]
    %v720 = vld [vmem:[#allocation7 + $0x1a0] sm:$0xff]
    %v721 = vld [vmem:[#allocation7 + $0x1a8] sm:$0xff]
    %v722 = vld [vmem:[#allocation7 + $0x1b0] sm:$0xff]
    %v723 = vld [vmem:[#allocation7 + $0x1b8] sm:$0xff]
    %v724 = vld [vmem:[#allocation7 + $0x1c0] sm:$0xff]
    %v725 = vld [vmem:[#allocation7 + $0x1c8] sm:$0xff]
    %v726 = vld [vmem:[#allocation7 + $0x1d0] sm:$0xff]
    %v727 = vld [vmem:[#allocation7 + $0x1d8] sm:$0xff]
    %v728 = vld [vmem:[#allocation7 + $0x1e0] sm:$0xff]
    %v729 = vld [vmem:[#allocation7 + $0x1e8] sm:$0xff]
    %v730 = vld [vmem:[#allocation7 + $0x1f0] sm:$0xff]
    %v731 = vld [vmem:[#allocation7 + $0x1f8] sm:$0xff]
    %732 = vmatprep.subr.mxu0 0.0
    %733 = vmatpush1.msra.mxu0 %v668
    %734 = vmatprep.subr.mxu0 0.0
    %735 = vmatpush1.msra.mxu0 %v669
    %736 = vmatprep.subr.mxu0 0.0
    %737 = vmatpush1.msra.mxu0 %v670
    %738 = vmatprep.subr.mxu0 0.0
    %739 = vmatpush1.msra.mxu0 %v671
    %740 = vmatprep.subr.mxu0 0.0
    %741 = vmatpush1.msra.mxu0 %v672
    %742 = vmatprep.subr.mxu0 0.0
    %743 = vmatpush1.msra.mxu0 %v673
    %744 = vmatprep.subr.mxu0 0.0
    %745 = vmatpush1.msra.mxu0 %v674
    %746 = vmatprep.subr.mxu0 0.0
    %747 = vmatpush1.msra.mxu0 %v675
    %748 = vmatprep.subr.mxu0 0.0
    %749 = vmatpush1.msra.mxu0 %v676
    %750 = vmatprep.subr.mxu0 0.0
    %751 = vmatpush1.msra.mxu0 %v677
    %752 = vmatprep.subr.mxu0 0.0
    %753 = vmatpush1.msra.mxu0 %v678
    %754 = vmatprep.subr.mxu0 0.0
    %755 = vmatpush1.msra.mxu0 %v679
    %756 = vmatprep.subr.mxu0 0.0
    %757 = vmatpush1.msra.mxu0 %v680
    %758 = vmatprep.subr.mxu0 0.0
    %759 = vmatpush1.msra.mxu0 %v681
    %760 = vmatprep.subr.mxu0 0.0
    %761 = vmatpush1.msra.mxu0 %v682
    %762 = vmatprep.subr.mxu0 0.0
    %763 = vmatpush1.msra.mxu0 %v683
    %764 = vmatprep.subr.mxu0 0.0
    %765 = vmatpush1.msra.mxu0 %v684
    %766 = vmatprep.subr.mxu0 0.0
    %767 = vmatpush1.msra.mxu0 %v685
    %768 = vmatprep.subr.mxu0 0.0
    %769 = vmatpush1.msra.mxu0 %v686
    %770 = vmatprep.subr.mxu0 0.0
    %771 = vmatpush1.msra.mxu0 %v687
    %772 = vmatprep.subr.mxu0 0.0
    %773 = vmatpush1.msra.mxu0 %v688
    %774 = vmatprep.subr.mxu0 0.0
    %775 = vmatpush1.msra.mxu0 %v689
    %776 = vmatprep.subr.mxu0 0.0
    %777 = vmatpush1.msra.mxu0 %v690
    %778 = vmatprep.subr.mxu0 0.0
    %779 = vmatpush1.msra.mxu0 %v691
    %780 = vmatprep.subr.mxu0 0.0
    %781 = vmatpush1.msra.mxu0 %v692
    %782 = vmatprep.subr.mxu0 0.0
    %783 = vmatpush1.msra.mxu0 %v693
    %784 = vmatprep.subr.mxu0 0.0
    %785 = vmatpush1.msra.mxu0 %v694
    %786 = vmatprep.subr.mxu0 0.0
    %787 = vmatpush1.msra.mxu0 %v695
    %788 = vmatprep.subr.mxu0 0.0
    %789 = vmatpush1.msra.mxu0 %v696
    %790 = vmatprep.subr.mxu0 0.0
    %791 = vmatpush1.msra.mxu0 %v697
    %792 = vmatprep.subr.mxu0 0.0
    %793 = vmatpush1.msra.mxu0 %v698
    %794 = vmatprep.subr.mxu0 0.0
    %795 = vmatpush1.msra.mxu0 %v699
    %796 = vmatprep.mubr.f32.mxu0 %v657
    %797 = vmatmul.mubr.f32.gmra.mrb[0].mxu0 %v656
    %v798 = vpop.f32.mrb[0].mxu0
    %v799 = vadd.f32 0.0, %v798
    %v800 = vpop.f32.mrb[0].mxu0
    %801 = vmatprep.mubr.f32.mxu0 %v661
    %802 = vmatmul.mubr.f32.gmra.mrb[0].mxu0 %v660
    %v803 = vpop.f32.mrb[0].mxu0
    %v804 = vadd.f32 0.0, %v803
    %v805 = vpop.f32.mrb[0].mxu0
    %806 = vmatprep.mubr.f32.mxu0 %v665
    %807 = vmatmul.mubr.f32.gmra.mrb[0].mxu0 %v664
    %v808 = vpop.f32.mrb[0].mxu0
    %v809 = vadd.f32 0.0, %v808
    %v810 = vpop.f32.mrb[0].mxu0
    %811 = vdwg.mxu0
    %812 = vmatprep.subr.mxu0 0.0
    %813 = vmatpush1.msra.mxu0 %v700
    %814 = vmatprep.subr.mxu0 0.0
    %815 = vmatpush1.msra.mxu0 %v701
    %816 = vmatprep.subr.mxu0 0.0
    %817 = vmatpush1.msra.mxu0 %v702
    %818 = vmatprep.subr.mxu0 0.0
    %819 = vmatpush1.msra.mxu0 %v703
    %820 = vmatprep.subr.mxu0 0.0
    %821 = vmatpush1.msra.mxu0 %v704
    %822 = vmatprep.subr.mxu0 0.0
    %823 = vmatpush1.msra.mxu0 %v705
    %824 = vmatprep.subr.mxu0 0.0
    %825 = vmatpush1.msra.mxu0 %v706
    %826 = vmatprep.subr.mxu0 0.0
    %827 = vmatpush1.msra.mxu0 %v707
    %828 = vmatprep.subr.mxu0 0.0
    %829 = vmatpush1.msra.mxu0 %v708
    %830 = vmatprep.subr.mxu0 0.0
    %831 = vmatpush1.msra.mxu0 %v709
    %832 = vmatprep.subr.mxu0 0.0
    %833 = vmatpush1.msra.mxu0 %v710
    %834 = vmatprep.subr.mxu0 0.0
    %835 = vmatpush1.msra.mxu0 %v711
    %836 = vmatprep.subr.mxu0 0.0
    %837 = vmatpush1.msra.mxu0 %v712
    %838 = vmatprep.subr.mxu0 0.0
    %839 = vmatpush1.msra.mxu0 %v713
    %840 = vmatprep.subr.mxu0 0.0
    %841 = vmatpush1.msra.mxu0 %v714
    %842 = vmatprep.subr.mxu0 0.0
    %843 = vmatpush1.msra.mxu0 %v715
    %844 = vmatprep.subr.mxu0 0.0
    %845 = vmatpush1.msra.mxu0 %v716
    %846 = vmatprep.subr.mxu0 0.0
    %847 = vmatpush1.msra.mxu0 %v717
    %848 = vmatprep.subr.mxu0 0.0
    %849 = vmatpush1.msra.mxu0 %v718
    %850 = vmatprep.subr.mxu0 0.0
    %851 = vmatpush1.msra.mxu0 %v719
    %852 = vmatprep.subr.mxu0 0.0
    %853 = vmatpush1.msra.mxu0 %v720
    %854 = vmatprep.subr.mxu0 0.0
    %855 = vmatpush1.msra.mxu0 %v721
    %856 = vmatprep.subr.mxu0 0.0
    %857 = vmatpush1.msra.mxu0 %v722
    %858 = vmatprep.subr.mxu0 0.0
    %859 = vmatpush1.msra.mxu0 %v723
    %860 = vmatprep.subr.mxu0 0.0
    %861 = vmatpush1.msra.mxu0 %v724
    %862 = vmatprep.subr.mxu0 0.0
    %863 = vmatpush1.msra.mxu0 %v725
    %864 = vmatprep.subr.mxu0 0.0
    %865 = vmatpush1.msra.mxu0 %v726
    %866 = vmatprep.subr.mxu0 0.0
    %867 = vmatpush1.msra.mxu0 %v727
    %868 = vmatprep.subr.mxu0 0.0
    %869 = vmatpush1.msra.mxu0 %v728
    %870 = vmatprep.subr.mxu0 0.0
    %871 = vmatpush1.msra.mxu0 %v729
    %872 = vmatprep.subr.mxu0 0.0
    %873 = vmatpush1.msra.mxu0 %v730
    %874 = vmatprep.subr.mxu0 0.0
    %875 = vmatpush1.msra.mxu0 %v731
    %876 = vmatprep.mubr.f32.mxu0 %v659
    %877 = vmatmul.mubr.f32.gmra.mrb[0].mxu0 %v658
    %v878 = vpop.f32.mrb[0].mxu0
    %v879 = vadd.f32 %v799, %v878
    %v880 = vpop.f32.mrb[0].mxu0
    %881 = vmatprep.mubr.f32.mxu0 %v663
    %882 = vmatmul.mubr.f32.gmra.mrb[0].mxu0 %v662
    %v883 = vpop.f32.mrb[0].mxu0
    %v884 = vadd.f32 %v804, %v883
    %v885 = vpop.f32.mrb[0].mxu0
    %886 = vmatprep.mubr.f32.mxu0 %v667
    %887 = vmatmul.mubr.f32.gmra.mrb[0].mxu0 %v666
    %v888 = vpop.f32.mrb[0].mxu0
    %v889 = vadd.f32 %v809, %v888
    %v890 = vpop.f32.mrb[0].mxu0
    %891 = vdwg.mxu0
    %892 = vst [vmem:[#allocation8] sm:$0xff] %v879
    %893 = vst [vmem:[#allocation8 + $0x8] sm:$0xff] %v884
    %894 = vst [vmem:[#allocation8 + $0x10] sm:$0xff] %v889
    // Predicated region
    $region26: #{tpu_custom_call.1} parent=1 // pred_check
      _
    $region27: #{tpu_custom_call.1} parent=1 // pred_check_branch
      %896 = sbr.rel (0) target = $region29
    $region28: #{tpu_custom_call.1} parent=1 // pred_region
      %s898 = ssub.s32 384, 384
      %899 = vsyncadd [#allocation4], %s898
      %s900 = sshll.u32 [#allocation8], 4
      %s901 = int_to_ptr.vmem [resolvable:$true] %s900
      %906 = dma.vmem_to_hbm [thread:$0]  %s901, 384, %s3, [#allocation4], 128, 128, 8
    $region29: #{tpu_custom_call.1} parent=1 // pred_fallthru
      _
    // Predicated region
    $region30: #{tpu_custom_call.1} parent=1 // pred_check
      _
    $region31: #{tpu_custom_call.1} parent=1 // pred_check_branch
      %908 = sbr.rel (0) target = $region33
    $region32: #{tpu_custom_call.1} parent=1 // pred_region
      %909 = dma.done [#allocation4], 384
    $region33: #{tpu_custom_call.1} parent=1 // pred_fallthru
      _
    %910 = vsyncpa [#allocation3], 1
    %911 = vsyncpa [#allocation6], 1
    %912 = vsyncpa [#allocation4], 1

</llo_original>
